<compile_context>
chip_gen: v5e
topology: v5e:2x2
jax: 0.10.0
libtpu: 0.0.40
codegen_flags: <defaults>
</compile_context>

<pallas_src>
from functools import partial

import jax
import jax.numpy as jnp
from jax.experimental import pallas as pl
from jax.experimental.pallas import tpu as pltpu

# ---- synthetic AlphaConfig ---------------------------------------------------
N_ATOMS   = 16      # total atoms (2 graphs x 8 atoms)
NUM_Z     = 8       # number of element types
HIDDEN    = 32      # hidden channel width
N_RBF     = 8       # radial basis functions (N_RBF * N_ATOMS == 128, lane-dense)
N_GRAPH   = 2       # batch size (number of graphs)
CUTOFF    = 5.0     # config.cutoff
RBF_GAMMA = 4.0

# ---- packed data slab layout ([D_ROWS, 128] f32, one DMA) --------------------
DROW_POS  = 0                       # 16 rows, lanes 0:3   pos [N,3]
DROW_POST = 16                      # rows 16..18          pos^T [3,N]
DROW_ZOH  = 24                      # 8 rows               one-hot(z)^T [Z,N]
DROW_BOHT = 32                      # 2 rows               one-hot(batch)^T [B,N]
DROW_BOH  = 40                      # 16 rows, lanes 0:B   one-hot(batch) [N,B]
D_ROWS    = 56

# ---- packed weight slab layout ([W_ROWS, 128] f32, one DMA) -------------------
ROW_EMB   = 0                       # 32 rows, lanes 0:Z   emb^T [H,Z]
ROW_WMSG1 = 32                      # 32 rows, lanes 0:H   wmsg1^T
ROW_WUPD1 = 64                      # 32 rows, lanes 0:H   wupd1^T
ROW_WMSG2 = 96
ROW_WUPD2 = 128
ROW_BUPD1 = 160                     # 32 rows, lane 0      bupd1 as column [H,1]
ROW_BUPD2 = 192
ROW_MISC  = 224                     # r0: wout^T (lanes 0:H); r1: bout; r2: mu_lane
ROW_REP   = 232                     # 16 rows               rep[j, k*N+j] = 1
ROW_SELT  = 248                     # 16 rows               selT[j, k*N+j] = wrbf[k]
W_ROWS    = 264                     # 264 * 128 * 4B = 132 KiB (was 188 KiB)


# ---- Pallas kernel -----------------------------------------------------------
def alphanet_kernel(cutoff, data_ref, w_ref, out_ref):
    f32 = jnp.float32
    N, H, Z, K, B = N_ATOMS, HIDDEN, NUM_Z, N_RBF, N_GRAPH

    # ---- unpack the data slab (static sub-slices of one VMEM block) ----
    pos   = data_ref[DROW_POS:DROW_POS + N, 0:3]          # [N, 3]
    pos_t = data_ref[DROW_POST:DROW_POST + 3, 0:N]        # [3, N]
    zoh_t = data_ref[DROW_ZOH:DROW_ZOH + Z, 0:N]          # [Z, N]
    boh_t = data_ref[DROW_BOHT:DROW_BOHT + B, 0:N]        # [B, N]
    boh   = data_ref[DROW_BOH:DROW_BOH + N, 0:B]          # [N, B]

    # ---- process_positions_and_edges: dense N x N radius graph ----
    # per-coordinate outer differences (no gram-matrix cancellation)
    d2 = jnp.zeros((N, N), f32)
    for c in range(3):                                    # static, 3 coordinates
        dc = pos[:, c:c + 1] - pos_t[c:c + 1, :]          # [N,1]-[1,N] -> [N,N]
        d2 = d2 + dc * dc
    d = jnp.sqrt(d2 + 1e-12)                              # only needed for RBFs

    row = jax.lax.broadcasted_iota(jnp.int32, (N, N), 0)
    col = jax.lax.broadcasted_iota(jnp.int32, (N, N), 1)
    same_graph = jnp.dot(boh, boh_t, preferred_element_type=f32) > 0.5
    cut2  = cutoff * cutoff
    valid = same_graph & (d2 < cut2) & (row != col)
    # smooth envelope in d^2 space, clamped explicitly (does not rely on mask)
    fcut  = (1.0 - jnp.minimum(d2 * (1.0 / cut2), 1.0)) ** 2

    # ---- RBF edge weights: ONE lane-dense exp over [N, K*N] = [16,128] ----
    misc    = w_ref[ROW_MISC:ROW_MISC + 8, :]             # [8, 128]
    wout_t  = misc[0:1, 0:H]                              # [1, H]
    bout    = misc[1:2, 0:1]                              # [1, 1]
    mu_lane = misc[2:3, 0:K * N]                          # [1, K*N], mu[k] per block
    rep   = w_ref[ROW_REP:ROW_REP + N, 0:K * N]           # [N, K*N]  replication
    sel_t = w_ref[ROW_SELT:ROW_SELT + N, 0:K * N]         # [N, K*N]  wrbf-weighted select^T

    d_tile = jnp.dot(d, rep, preferred_element_type=f32)  # [N, K*N]  d[i,j] per block
    g      = d_tile - mu_lane
    gauss  = jnp.exp(-RBF_GAMMA * g * g)                  # single EUP pass, 2 vregs
    # contract the last dim of both operands (MXU trans_b): [N,K*N] x [N,K*N]^T -> [N,N]
    w_edge = jax.lax.dot_general(gauss, sel_t, (((1,), (1,)), ((), ())),
                                 preferred_element_type=f32)

    adj = jnp.where(valid, fcut * w_edge, 0.0)            # symmetric weighted adjacency

    # ---- AlphaNet body in feature-major (transposed) layout ----
    emb_t = w_ref[ROW_EMB:ROW_EMB + H, 0:Z]               # [H, Z]
    h = jnp.dot(emb_t, zoh_t, preferred_element_type=f32)  # [H, N] embedding

    for wm, wu, bu in ((ROW_WMSG1, ROW_WUPD1, ROW_BUPD1),
                       (ROW_WMSG2, ROW_WUPD2, ROW_BUPD2)):
        wmsg_t = w_ref[wm:wm + H, 0:H]
        wupd_t = w_ref[wu:wu + H, 0:H]
        bupd   = w_ref[bu:bu + H, 0:1]                    # [H, 1]
        hm  = jnp.dot(wmsg_t, h, preferred_element_type=f32)   # [H, N]
        msg = jnp.dot(hm, adj, preferred_element_type=f32)     # aggregate (adj symmetric)
        h   = h + jax.nn.silu(
            jnp.dot(wupd_t, msg, preferred_element_type=f32) + bupd)

    e_row      = jnp.dot(wout_t, h, preferred_element_type=f32) + bout   # [1, N]
    energy_row = jnp.dot(e_row, boh, preferred_element_type=f32)         # [1, B]

    # ---- compose the [8,128] output tile in registers, ONE unmasked store ----
    row_e = jnp.concatenate([e_row, jnp.zeros((1, 128 - N), f32)], axis=1)       # [1,128]
    row_g = jnp.concatenate([energy_row, jnp.zeros((1, 128 - B), f32)], axis=1)  # [1,128]
    tile  = jnp.concatenate([row_e, row_g, jnp.zeros((6, 128), f32)], axis=0)    # [8,128]
    out_ref[...] = tile


# ---- slab packing -------------------------------------------------------------
def _pack_data(pos, z, batch):
    """Per-call: pack positions / one-hots into one [56,128] f32 slab."""
    n = pos.shape[0]
    zoh = jax.nn.one_hot(z, NUM_Z, dtype=jnp.float32)          # [N, Z]
    boh = jax.nn.one_hot(batch, N_GRAPH, dtype=jnp.float32)    # [N, B]
    slab = jnp.zeros((D_ROWS, 128), jnp.float32)
    slab = slab.at[DROW_POS:DROW_POS + n, 0:3].set(pos)
    slab = slab.at[DROW_POST:DROW_POST + 3, 0:n].set(pos.T)
    slab = slab.at[DROW_ZOH:DROW_ZOH + NUM_Z, 0:n].set(zoh.T)
    slab = slab.at[DROW_BOHT:DROW_BOHT + N_GRAPH, 0:n].set(boh.T)
    slab = slab.at[DROW_BOH:DROW_BOH + n, 0:N_GRAPH].set(boh)
    return slab


def make_weight_slab(params):
    """Called ONCE at model init (hoisted out of the per-call path)."""
    n, h, z, k = N_ATOMS, HIDDEN, NUM_Z, N_RBF
    slab = jnp.zeros((W_ROWS, 128), jnp.float32)
    slab = slab.at[ROW_EMB:ROW_EMB + h, 0:z].set(params['emb'].T)
    slab = slab.at[ROW_WMSG1:ROW_WMSG1 + h, 0:h].set(params['wmsg1'].T)
    slab = slab.at[ROW_WUPD1:ROW_WUPD1 + h, 0:h].set(params['wupd1'].T)
    slab = slab.at[ROW_WMSG2:ROW_WMSG2 + h, 0:h].set(params['wmsg2'].T)
    slab = slab.at[ROW_WUPD2:ROW_WUPD2 + h, 0:h].set(params['wupd2'].T)
    slab = slab.at[ROW_BUPD1:ROW_BUPD1 + h, 0:1].set(params['bupd1'].T)
    slab = slab.at[ROW_BUPD2:ROW_BUPD2 + h, 0:1].set(params['bupd2'].T)
    slab = slab.at[ROW_MISC, 0:h].set(params['wout'][:, 0])
    slab = slab.at[ROW_MISC + 1, 0].set(params['bout'][0, 0])
    slab = slab.at[ROW_MISC + 2, 0:k * n].set(jnp.repeat(params['mu'][0], n))
    eye_n = jnp.eye(n, dtype=jnp.float32)
    rep = jnp.tile(eye_n, (1, k))                               # [N, K*N], rep[j, kN+j]=1
    sel_t = rep * jnp.repeat(params['wrbf'][0], n)[None, :]     # [N, K*N], selT[j, kN+j]=wrbf[k]
    slab = slab.at[ROW_REP:ROW_REP + n, 0:k * n].set(rep)
    slab = slab.at[ROW_SELT:ROW_SELT + n, 0:k * n].set(sel_t)
    return slab


# ---- wrapper -----------------------------------------------------------------
def alphanet_forward(pos, z, batch, natoms, w_slab, cell=None, cutoff=CUTOFF):
    del cell, natoms  # PBC not used in this synthetic config
    data_slab = _pack_data(pos, z, batch)       # one [56,128] VMEM input

    vmem = pl.BlockSpec(memory_space=pltpu.MemorySpace.VMEM)
    out = pl.pallas_call(
        partial(alphanet_kernel, cutoff),       # cutoff: static Python float
        out_shape=jax.ShapeDtypeStruct((8, 128), jnp.float32),
        in_specs=[vmem, vmem],
        out_specs=vmem,
    )(data_slab, w_slab)

    e_atom = out[0, 0:N_ATOMS].reshape(N_ATOMS, 1)
    energy = out[1, 0:N_GRAPH].reshape(N_GRAPH, 1)
    return energy, e_atom


# ---- pure-JAX reference (for correctness check) -------------------------------
def alphanet_ref(pos, z, batch, params, cutoff=CUTOFF):
    zoh = jax.nn.one_hot(z, NUM_Z, dtype=jnp.float32)
    boh = jax.nn.one_hot(batch, N_GRAPH, dtype=jnp.float32)
    diff = pos[:, None, :] - pos[None, :, :]
    d = jnp.sqrt(jnp.maximum(jnp.sum(diff * diff, -1), 0.0) + 1e-12)
    n = pos.shape[0]
    same = batch[:, None] == batch[None, :]
    eye = jnp.eye(n, dtype=bool)
    mask = jnp.where(same & (d < cutoff) & (~eye), 1.0, 0.0)
    x = jnp.minimum(d / cutoff, 1.0)
    fcut = (1.0 - x * x) ** 2
    mu = params['mu'][0]
    wrbf = params['wrbf'][0]
    w_edge = jnp.sum(wrbf[None, None, :]
                     * jnp.exp(-RBF_GAMMA * (d[:, :, None] - mu[None, None, :]) ** 2), -1)
    adj = mask * fcut * w_edge
    h = zoh @ params['emb']
    for a, b, c in (('wmsg1', 'wupd1', 'bupd1'), ('wmsg2', 'wupd2', 'bupd2')):
        msg = adj @ (h @ params[a])
        h = h + jax.nn.silu(msg @ params[b] + params[c])
    e_atom = h @ params['wout'] + params['bout']
    energy = boh.T @ e_atom
    return energy, e_atom


# ---- deterministic parameter init ---------------------------------------------
def init_params(key):
    ks = jax.random.split(key, 8)
    s = 0.1
    return {
        'emb':   s * jax.random.normal(ks[0], (NUM_Z, HIDDEN), jnp.float32),
        'wmsg1': s * jax.random.normal(ks[1], (HIDDEN, HIDDEN), jnp.float32),
        'wupd1': s * jax.random.normal(ks[2], (HIDDEN, HIDDEN), jnp.float32),
        'bupd1': jnp.zeros((1, HIDDEN), jnp.float32),
        'wmsg2': s * jax.random.normal(ks[3], (HIDDEN, HIDDEN), jnp.float32),
        'wupd2': s * jax.random.normal(ks[4], (HIDDEN, HIDDEN), jnp.float32),
        'bupd2': jnp.zeros((1, HIDDEN), jnp.float32),
        'wout':  s * jax.random.normal(ks[5], (HIDDEN, 1), jnp.float32),
        'bout':  jnp.zeros((1, 1), jnp.float32),
        'mu':    jnp.linspace(0.0, CUTOFF, N_RBF, dtype=jnp.float32).reshape(1, N_RBF),
        'wrbf':  s * jax.random.normal(ks[6], (1, N_RBF), jnp.float32),
    }


if __name__ == "__main__":
    key = jax.random.PRNGKey(0)
    k_pos, k_z, k_param = jax.random.split(key, 3)

    # 2 graphs x 8 atoms in a ~4 Angstrom box (so the 5.0 cutoff produces edges)
    pos    = 4.0 * jax.random.uniform(k_pos, (N_ATOMS, 3), jnp.float32)
    z      = jax.random.randint(k_z, (N_ATOMS,), 1, NUM_Z)
    batch  = jnp.concatenate([jnp.zeros(8, jnp.int32), jnp.ones(8, jnp.int32)])
    natoms = jnp.array([8, 8], jnp.int32)
    params = init_params(k_param)

    # weight slab packed ONCE at model init (hoisted out of the per-call path)
    w_slab = jax.block_until_ready(make_weight_slab(params))

    fwd = jax.jit(alphanet_forward)              # fuses data packing + pallas_call
    energy, e_atom = fwd(pos, z, batch, natoms, w_slab)
    jax.block_until_ready((energy, e_atom))

    energy_ref, e_atom_ref = alphanet_ref(pos, z, batch, params)
    assert jnp.allclose(energy, energy_ref, rtol=1e-3, atol=1e-3), (energy, energy_ref)
    assert jnp.allclose(e_atom, e_atom_ref, rtol=1e-3, atol=1e-3)
    print("KERNEL_OK")
</pallas_src>

<mosaic_0001>
module attributes {stable_mosaic.version = 11 : i64} {
  func.func @alphanet_kernel(%arg0: memref<56x128xf32, #tpu.memory_space<vmem>>, %arg1: memref<264x128xf32, #tpu.memory_space<vmem>>, %arg2: memref<8x128xf32, #tpu.memory_space<vmem>>) attributes {dimension_semantics = [], scalar_prefetch = 0 : i64, scratch_operands = 0 : i64, tpu.core_type = #tpu.core_type<tc>} {
    %c0 = arith.constant 0 : index
    %c0_0 = arith.constant 0 : index
    %0 = vector.load %arg0[%c0, %c0_0] : memref<56x128xf32, #tpu.memory_space<vmem>>, vector<16x3xf32>
    %c16 = arith.constant 16 : index
    %c0_1 = arith.constant 0 : index
    %1 = vector.load %arg0[%c16, %c0_1] : memref<56x128xf32, #tpu.memory_space<vmem>>, vector<3x16xf32>
    %c24 = arith.constant 24 : index
    %c0_2 = arith.constant 0 : index
    %2 = vector.load %arg0[%c24, %c0_2] : memref<56x128xf32, #tpu.memory_space<vmem>>, vector<8x16xf32>
    %c32 = arith.constant 32 : index
    %c0_3 = arith.constant 0 : index
    %3 = vector.load %arg0[%c32, %c0_3] : memref<56x128xf32, #tpu.memory_space<vmem>>, vector<2x16xf32>
    %c40 = arith.constant 40 : index
    %c0_4 = arith.constant 0 : index
    %4 = vector.load %arg0[%c40, %c0_4] : memref<56x128xf32, #tpu.memory_space<vmem>>, vector<16x2xf32>
    %cst = arith.constant 0.000000e+00 : f32
    %5 = vector.broadcast %cst : f32 to vector<16x16xf32>
    %6 = vector.extract_strided_slice %0 {offsets = [0, 0], sizes = [16, 1], strides = [1, 1]} : vector<16x3xf32> to vector<16x1xf32>
    %7 = vector.extract_strided_slice %1 {offsets = [0, 0], sizes = [1, 16], strides = [1, 1]} : vector<3x16xf32> to vector<1x16xf32>
    %8 = vector.broadcast %6 : vector<16x1xf32> to vector<16x16xf32>
    %9 = vector.broadcast %7 : vector<1x16xf32> to vector<16x16xf32>
    %10 = arith.subf %8, %9 : vector<16x16xf32>
    %11 = arith.mulf %10, %10 : vector<16x16xf32>
    %12 = arith.addf %5, %11 : vector<16x16xf32>
    %13 = vector.extract_strided_slice %0 {offsets = [0, 1], sizes = [16, 1], strides = [1, 1]} : vector<16x3xf32> to vector<16x1xf32>
    %14 = vector.extract_strided_slice %1 {offsets = [1, 0], sizes = [1, 16], strides = [1, 1]} : vector<3x16xf32> to vector<1x16xf32>
    %15 = vector.broadcast %13 : vector<16x1xf32> to vector<16x16xf32>
    %16 = vector.broadcast %14 : vector<1x16xf32> to vector<16x16xf32>
    %17 = arith.subf %15, %16 : vector<16x16xf32>
    %18 = arith.mulf %17, %17 : vector<16x16xf32>
    %19 = arith.addf %12, %18 : vector<16x16xf32>
    %20 = vector.extract_strided_slice %0 {offsets = [0, 2], sizes = [16, 1], strides = [1, 1]} : vector<16x3xf32> to vector<16x1xf32>
    %21 = vector.extract_strided_slice %1 {offsets = [2, 0], sizes = [1, 16], strides = [1, 1]} : vector<3x16xf32> to vector<1x16xf32>
    %22 = vector.broadcast %20 : vector<16x1xf32> to vector<16x16xf32>
    %23 = vector.broadcast %21 : vector<1x16xf32> to vector<16x16xf32>
    %24 = arith.subf %22, %23 : vector<16x16xf32>
    %25 = arith.mulf %24, %24 : vector<16x16xf32>
    %26 = arith.addf %19, %25 : vector<16x16xf32>
    %cst_5 = arith.constant 9.99999996E-13 : f32
    %27 = vector.broadcast %cst_5 : f32 to vector<16x16xf32>
    %28 = arith.addf %26, %27 : vector<16x16xf32>
    %29 = math.sqrt %28 : vector<16x16xf32>
    %30 = tpu.iota {dimensions = array<i32: 0>} : vector<16x16xi32>
    %31 = tpu.iota {dimensions = array<i32: 1>} : vector<16x16xi32>
    %cst_6 = arith.constant dense<0.000000e+00> : vector<16x16xf32>
    %32 = tpu.matmul %4, %3, %cst_6 {dimension_numbers = #tpu.dot_dimension_numbers<[1], [0], [0], [1], [0, 0, 1, 1], [], []>} : vector<16x2xf32>, vector<2x16xf32>, vector<16x16xf32> -> vector<16x16xf32>
    %cst_7 = arith.constant 5.000000e-01 : f32
    %33 = vector.broadcast %cst_7 : f32 to vector<16x16xf32>
    %34 = arith.cmpf ogt, %32, %33 : vector<16x16xf32>
    %cst_8 = arith.constant 2.500000e+01 : f32
    %35 = vector.broadcast %cst_8 : f32 to vector<16x16xf32>
    %36 = arith.cmpf olt, %26, %35 : vector<16x16xf32>
    %37 = arith.andi %34, %36 : vector<16x16xi1>
    %38 = arith.cmpi ne, %30, %31 : vector<16x16xi32>
    %39 = arith.andi %37, %38 : vector<16x16xi1>
    %cst_9 = arith.constant 4.000000e-02 : f32
    %40 = vector.broadcast %cst_9 : f32 to vector<16x16xf32>
    %41 = arith.mulf %26, %40 : vector<16x16xf32>
    %cst_10 = arith.constant 1.000000e+00 : f32
    %42 = vector.broadcast %cst_10 : f32 to vector<16x16xf32>
    %43 = arith.minimumf %41, %42 : vector<16x16xf32>
    %cst_11 = arith.constant 1.000000e+00 : f32
    %44 = vector.broadcast %cst_11 : f32 to vector<16x16xf32>
    %45 = arith.subf %44, %43 : vector<16x16xf32>
    %46 = arith.mulf %45, %45 : vector<16x16xf32>
    %c224 = arith.constant 224 : index
    %c0_12 = arith.constant 0 : index
    %47 = vector.load %arg1[%c224, %c0_12] : memref<264x128xf32, #tpu.memory_space<vmem>>, vector<8x128xf32>
    %48 = vector.extract_strided_slice %47 {offsets = [0, 0], sizes = [1, 32], strides = [1, 1]} : vector<8x128xf32> to vector<1x32xf32>
    %49 = vector.extract_strided_slice %47 {offsets = [1, 0], sizes = [1, 1], strides = [1, 1]} : vector<8x128xf32> to vector<1x1xf32>
    %50 = vector.extract_strided_slice %47 {offsets = [2, 0], sizes = [1, 128], strides = [1, 1]} : vector<8x128xf32> to vector<1x128xf32>
    %c232 = arith.constant 232 : index
    %c0_13 = arith.constant 0 : index
    %51 = vector.load %arg1[%c232, %c0_13] : memref<264x128xf32, #tpu.memory_space<vmem>>, vector<16x128xf32>
    %c248 = arith.constant 248 : index
    %c0_14 = arith.constant 0 : index
    %52 = vector.load %arg1[%c248, %c0_14] : memref<264x128xf32, #tpu.memory_space<vmem>>, vector<16x128xf32>
    %cst_15 = arith.constant dense<0.000000e+00> : vector<16x128xf32>
    %53 = tpu.matmul %29, %51, %cst_15 {dimension_numbers = #tpu.dot_dimension_numbers<[1], [0], [0], [1], [0, 0, 1, 1], [], []>} : vector<16x16xf32>, vector<16x128xf32>, vector<16x128xf32> -> vector<16x128xf32>
    %54 = vector.broadcast %50 : vector<1x128xf32> to vector<16x128xf32>
    %55 = arith.subf %53, %54 : vector<16x128xf32>
    %cst_16 = arith.constant -4.000000e+00 : f32
    %56 = vector.broadcast %cst_16 : f32 to vector<16x128xf32>
    %57 = arith.mulf %56, %55 : vector<16x128xf32>
    %58 = arith.mulf %57, %55 : vector<16x128xf32>
    %59 = math.exp %58 : vector<16x128xf32>
    %cst_17 = arith.constant dense<0.000000e+00> : vector<16x16xf32>
    %60 = tpu.matmul %59, %52, %cst_17 {dimension_numbers = #tpu.dot_dimension_numbers<[1], [1], [0], [0], [0, 0, 1, 0], [], []>} : vector<16x128xf32>, vector<16x128xf32>, vector<16x16xf32> -> vector<16x16xf32>
    %61 = arith.mulf %46, %60 : vector<16x16xf32>
    %cst_18 = arith.constant 0.000000e+00 : f32
    %62 = vector.broadcast %cst_18 : f32 to vector<16x16xf32>
    %63 = arith.select %39, %61, %62 : vector<16x16xi1>, vector<16x16xf32>
    %c0_19 = arith.constant 0 : index
    %c0_20 = arith.constant 0 : index
    %64 = vector.load %arg1[%c0_19, %c0_20] : memref<264x128xf32, #tpu.memory_space<vmem>>, vector<32x8xf32>
    %cst_21 = arith.constant dense<0.000000e+00> : vector<32x16xf32>
    %65 = tpu.matmul %64, %2, %cst_21 {dimension_numbers = #tpu.dot_dimension_numbers<[1], [0], [0], [1], [0, 0, 1, 1], [], []>} : vector<32x8xf32>, vector<8x16xf32>, vector<32x16xf32> -> vector<32x16xf32>
    %c32_22 = arith.constant 32 : index
    %c0_23 = arith.constant 0 : index
    %66 = vector.load %arg1[%c32_22, %c0_23] : memref<264x128xf32, #tpu.memory_space<vmem>>, vector<32x32xf32>
    %c64 = arith.constant 64 : index
    %c0_24 = arith.constant 0 : index
    %67 = vector.load %arg1[%c64, %c0_24] : memref<264x128xf32, #tpu.memory_space<vmem>>, vector<32x32xf32>
    %c160 = arith.constant 160 : index
    %c0_25 = arith.constant 0 : index
    %68 = vector.load %arg1[%c160, %c0_25] : memref<264x128xf32, #tpu.memory_space<vmem>>, vector<32x1xf32>
    %cst_26 = arith.constant dense<0.000000e+00> : vector<32x16xf32>
    %69 = tpu.matmul %66, %65, %cst_26 {dimension_numbers = #tpu.dot_dimension_numbers<[1], [0], [0], [1], [0, 0, 1, 1], [], []>} : vector<32x32xf32>, vector<32x16xf32>, vector<32x16xf32> -> vector<32x16xf32>
    %cst_27 = arith.constant dense<0.000000e+00> : vector<32x16xf32>
    %70 = tpu.matmul %69, %63, %cst_27 {dimension_numbers = #tpu.dot_dimension_numbers<[1], [0], [0], [1], [0, 0, 1, 1], [], []>} : vector<32x16xf32>, vector<16x16xf32>, vector<32x16xf32> -> vector<32x16xf32>
    %cst_28 = arith.constant dense<0.000000e+00> : vector<32x16xf32>
    %71 = tpu.matmul %67, %70, %cst_28 {dimension_numbers = #tpu.dot_dimension_numbers<[1], [0], [0], [1], [0, 0, 1, 1], [], []>} : vector<32x32xf32>, vector<32x16xf32>, vector<32x16xf32> -> vector<32x16xf32>
    %72 = vector.broadcast %68 : vector<32x1xf32> to vector<32x16xf32>
    %73 = arith.addf %71, %72 : vector<32x16xf32>
    %74 = arith.negf %73 : vector<32x16xf32>
    %75 = math.exp %74 : vector<32x16xf32>
    %cst_29 = arith.constant 1.000000e+00 : f32
    %76 = vector.broadcast %cst_29 : f32 to vector<32x16xf32>
    %77 = arith.addf %76, %75 : vector<32x16xf32>
    %78 = arith.divf %76, %77 : vector<32x16xf32>
    %79 = arith.mulf %73, %78 : vector<32x16xf32>
    %80 = arith.addf %65, %79 : vector<32x16xf32>
    %c96 = arith.constant 96 : index
    %c0_30 = arith.constant 0 : index
    %81 = vector.load %arg1[%c96, %c0_30] : memref<264x128xf32, #tpu.memory_space<vmem>>, vector<32x32xf32>
    %c128 = arith.constant 128 : index
    %c0_31 = arith.constant 0 : index
    %82 = vector.load %arg1[%c128, %c0_31] : memref<264x128xf32, #tpu.memory_space<vmem>>, vector<32x32xf32>
    %c192 = arith.constant 192 : index
    %c0_32 = arith.constant 0 : index
    %83 = vector.load %arg1[%c192, %c0_32] : memref<264x128xf32, #tpu.memory_space<vmem>>, vector<32x1xf32>
    %cst_33 = arith.constant dense<0.000000e+00> : vector<32x16xf32>
    %84 = tpu.matmul %81, %80, %cst_33 {dimension_numbers = #tpu.dot_dimension_numbers<[1], [0], [0], [1], [0, 0, 1, 1], [], []>} : vector<32x32xf32>, vector<32x16xf32>, vector<32x16xf32> -> vector<32x16xf32>
    %cst_34 = arith.constant dense<0.000000e+00> : vector<32x16xf32>
    %85 = tpu.matmul %84, %63, %cst_34 {dimension_numbers = #tpu.dot_dimension_numbers<[1], [0], [0], [1], [0, 0, 1, 1], [], []>} : vector<32x16xf32>, vector<16x16xf32>, vector<32x16xf32> -> vector<32x16xf32>
    %cst_35 = arith.constant dense<0.000000e+00> : vector<32x16xf32>
    %86 = tpu.matmul %82, %85, %cst_35 {dimension_numbers = #tpu.dot_dimension_numbers<[1], [0], [0], [1], [0, 0, 1, 1], [], []>} : vector<32x32xf32>, vector<32x16xf32>, vector<32x16xf32> -> vector<32x16xf32>
    %87 = vector.broadcast %83 : vector<32x1xf32> to vector<32x16xf32>
    %88 = arith.addf %86, %87 : vector<32x16xf32>
    %89 = arith.negf %88 : vector<32x16xf32>
    %90 = math.exp %89 : vector<32x16xf32>
    %cst_36 = arith.constant 1.000000e+00 : f32
    %91 = vector.broadcast %cst_36 : f32 to vector<32x16xf32>
    %92 = arith.addf %91, %90 : vector<32x16xf32>
    %93 = arith.divf %91, %92 : vector<32x16xf32>
    %94 = arith.mulf %88, %93 : vector<32x16xf32>
    %95 = arith.addf %80, %94 : vector<32x16xf32>
    %cst_37 = arith.constant dense<0.000000e+00> : vector<1x16xf32>
    %96 = tpu.matmul %48, %95, %cst_37 {dimension_numbers = #tpu.dot_dimension_numbers<[1], [0], [0], [1], [0, 0, 1, 1], [], []>} : vector<1x32xf32>, vector<32x16xf32>, vector<1x16xf32> -> vector<1x16xf32>
    %97 = vector.broadcast %49 : vector<1x1xf32> to vector<1x16xf32>
    %98 = arith.addf %96, %97 : vector<1x16xf32>
    %cst_38 = arith.constant dense<0.000000e+00> : vector<1x2xf32>
    %99 = tpu.matmul %98, %4, %cst_38 {dimension_numbers = #tpu.dot_dimension_numbers<[1], [0], [0], [1], [0, 0, 1, 1], [], []>} : vector<1x16xf32>, vector<16x2xf32>, vector<1x2xf32> -> vector<1x2xf32>
    %cst_39 = arith.constant 0.000000e+00 : f32
    %100 = vector.broadcast %cst_39 : f32 to vector<1x112xf32>
    %101 = tpu.concatenate %98, %100 in 1 : vector<1x16xf32>, vector<1x112xf32> -> vector<1x128xf32>
    %cst_40 = arith.constant 0.000000e+00 : f32
    %102 = vector.broadcast %cst_40 : f32 to vector<1x126xf32>
    %103 = tpu.concatenate %99, %102 in 1 : vector<1x2xf32>, vector<1x126xf32> -> vector<1x128xf32>
    %cst_41 = arith.constant 0.000000e+00 : f32
    %104 = vector.broadcast %cst_41 : f32 to vector<6x128xf32>
    %105 = tpu.concatenate %101, %103, %104 in 0 : vector<1x128xf32>, vector<1x128xf32>, vector<6x128xf32> -> vector<8x128xf32>
    %c0_42 = arith.constant 0 : index
    %c0_43 = arith.constant 0 : index
    %106 = vector.load %arg2[%c0_42, %c0_43] : memref<8x128xf32, #tpu.memory_space<vmem>>, vector<8x128xf32>
    tpu.vector_store %arg2[%c0_42, %c0_43], %105 {strides = array<i32>} : memref<8x128xf32, #tpu.memory_space<vmem>>, vector<8x128xf32>,
    return
  }
}

</mosaic_0001>

<llo_original>
// kernel: alphanet_forward.1
$region0: #{alphanet_forward.1}
  #allocation0 [shape = 'u32[]', space=smem, size = 0x4, offset = 0x4, fixed_abs, tag = 'smem constant byte address 0x4 - core index']
  #allocation1 [shape = 'u32[72,128]{1,0:T(1,128)}', space=vmem, size = 0x9000, scoped, tag = 'internal scratch']
  %s0 = inlined_call_operand.vmem [shape: f32[56,128], index: 0, kind: input, shape index: {}]
  %s1 = inlined_call_operand.hbm [shape: f32[264,128], index: 1, kind: input, shape index: {}]
  %s2 = inlined_call_operand.vmem [shape: f32[8,128], index: 2, kind: output, shape index: {}]
  %s3 = sld [smem:[#allocation0]]
  $region22: #{alphanet_forward.1} parent=0
    _
  %s5 = ssub.s32 1, %s3
  %s6 = scalar_select 0, %s5, %s3
  $region1: #{alphanet_forward.1} parent=0
    #allocation2 [shape = 'u8[135168]{0}', space=vmem, size = 0x21000, scoped, tag = 'input window, operand 1, single buffered']
    #allocation3 [shape = 's32[1]{0}', space=sflag, size = 0x4, scoped, tag = 'scoped memory for alphanet_forward.1']
    %7 = vsyncpa [#allocation3], 0
    // Predicated region
    $region2: #{alphanet_forward.1} parent=1 // pred_check
      _
    $region3: #{alphanet_forward.1} parent=1 // pred_check_branch
      %9 = sbr.rel (0) target = $region5
    $region4: #{alphanet_forward.1} parent=1 // pred_region
      _
    $region5: #{alphanet_forward.1} parent=1 // pred_fallthru
      _
    // Predicated region
    $region6: #{alphanet_forward.1} parent=1 // pred_check
      _
    $region7: #{alphanet_forward.1} parent=1 // pred_check_branch
      %11 = sbr.rel (0) target = $region9
    $region8: #{alphanet_forward.1} parent=1 // pred_region
      %13 = vsyncadd [#allocation3], 0
      %s14 = sshll.u32 %s1, 4
      %s15 = int_to_ptr.hbm [resolvable:$true] %s14
      %s16 = sshll.u32 [#allocation2], 4
      %s17 = int_to_ptr.vmem [resolvable:$true] %s16
      %22 = dma.hbm_to_vmem [thread:$0]  %s15, 4224, %s17, [#allocation3], 128, 128, 8
    $region9: #{alphanet_forward.1} parent=1 // pred_fallthru
      _
    // Predicated region
    $region10: #{alphanet_forward.1} parent=1 // pred_check
      _
    $region11: #{alphanet_forward.1} parent=1 // pred_check_branch
      %24 = sbr.rel (0) target = $region13
    $region12: #{alphanet_forward.1} parent=1 // pred_region
      %26 = dma.done [#allocation3], 4224
    $region13: #{alphanet_forward.1} parent=1 // pred_fallthru
      _
    %v27 = vld [vmem:[%s0] sm:$0xff]
    %v28 = vld [vmem:[%s0 + $0x8] sm:$0xff]
    %v29 = vld [vmem:[%s0 + $0x10] sm:$0x7]
    %v30 = vld [vmem:[%s0 + $0x18] sm:$0xff]
    %v31 = vld [vmem:[%s0 + $0x20] sm:$0x3]
    %v32 = vld [vmem:[%s0 + $0x28] sm:$0xff]
    %v33 = vld [vmem:[%s0 + $0x30] sm:$0xff]
    %35 = vset.pattern.permute.xlu0 0
    %36 = vperm.xlu0 %35, %v27
    %v37 = vpop.permute.xlu0 %36
    %40 = vset.pattern.permute.xlu0 0
    %41 = vperm.xlu0 %40, %v28
    %v42 = vpop.permute.xlu0 %41
    %v44 = vperm.slane %v29, 0
    %v45 = vsub.f32 %v37, %v44
    %v46 = vsub.f32 %v42, %v44
    %v47 = vmul.f32 %v45, %v45
    %v48 = vmul.f32 %v46, %v46
    %v49 = vadd.f32 %v47, 0.0
    %v50 = vadd.f32 %v48, 0.0
    %51 = vset.pattern.permute.xlu0 1
    %52 = vperm.xlu0 %51, %v27
    %v53 = vpop.permute.xlu0 %52
    %55 = vset.pattern.permute.xlu0 1
    %56 = vperm.xlu0 %55, %v28
    %v57 = vpop.permute.xlu0 %56
    %v59 = vperm.slane %v29, 1
    %v60 = vsub.f32 %v53, %v59
    %v61 = vsub.f32 %v57, %v59
    %v62 = vmul.f32 %v60, %v60
    %v63 = vmul.f32 %v61, %v61
    %v64 = vadd.f32 %v49, %v62
    %v65 = vadd.f32 %v50, %v63
    %66 = vset.pattern.permute.xlu0 2
    %67 = vperm.xlu0 %66, %v27
    %v68 = vpop.permute.xlu0 %67
    %70 = vset.pattern.permute.xlu0 2
    %71 = vperm.xlu0 %70, %v28
    %v72 = vpop.permute.xlu0 %71
    %v74 = vperm.slane %v29, 2
    %v75 = vsub.f32 %v68, %v74
    %v76 = vsub.f32 %v72, %v74
    %v77 = vmul.f32 %v75, %v75
    %v78 = vmul.f32 %v76, %v76
    %v79 = vadd.f32 %v64, %v77
    %v80 = vadd.f32 %v65, %v78
    %v81 = vadd.f32 %v79, 1e-12
    %v82 = vadd.f32 %v80, 1e-12
    %v83 = vrsqrt.pop %v81
    %v84 = vmul.f32 %v83, %v81
    %v85 = vmul.f32 %v84, %v83
    %v86 = vmul.f32 0.5, %v85
    %v87 = vsub.f32 1.5, %v86
    %v88 = vmul.f32 %v83, %v87
    %v89 = vmul.f32 %v81, %v88
    %vm90 = vcmp.eq.f32.partialorder %v81, inf
    %v91 = vsel %vm90, %v81, %v89
    %vm92 = vcmp.eq.f32.partialorder %v81, 0.0
    %v93 = vand.u32 %v81, 2147483648
    %v94 = vsel %vm92, %v93, %v91
    %v95 = vrsqrt.pop %v82
    %v96 = vmul.f32 %v95, %v82
    %v97 = vmul.f32 %v96, %v95
    %v98 = vmul.f32 0.5, %v97
    %v99 = vsub.f32 1.5, %v98
    %v100 = vmul.f32 %v95, %v99
    %v101 = vmul.f32 %v82, %v100
    %vm102 = vcmp.eq.f32.partialorder %v82, inf
    %v103 = vsel %vm102, %v82, %v101
    %vm104 = vcmp.eq.f32.partialorder %v82, 0.0
    %v105 = vand.u32 %v82, 2147483648
    %v106 = vsel %vm104, %v105, %v103
    %v107 = vlaneseq
    %v108 = vshrl.u32 %v107, 7
    %v109 = vadd.s32 %v108, 8
    %v110 = vlaneseq
    %v111 = vand.u32 %v110, 127
    %vm112 = vcmask 15360
    %v114 = vsel %vm112, %v32, 0
    %v117 = vsel %vm112, %v33, 0
    %vm119 = vcmask 1041408
    %v121 = vsel %vm119, %v31, 0
    %123 = vmatpush.msra.mxu0 0.0
    %124 = vmatpush.msra.mxu0 0.0
    %125 = vmatpush.msra.mxu0 0.0
    %126 = vmatpush.msra.mxu0 0.0
    %127 = vmatpush.msra.mxu0 0.0
    %128 = vmatpush.msra.mxu0 0.0
    %129 = vmatpush.msra.mxu0 0.0
    %130 = vmatpush.msra.mxu0 0.0
    %131 = vmatpush.msra.mxu0 0.0
    %132 = vmatpush.msra.mxu0 0.0
    %133 = vmatpush.msra.mxu0 0.0
    %134 = vmatpush.msra.mxu0 0.0
    %135 = vmatpush.msra.mxu0 0.0
    %136 = vmatpush.msra.mxu0 0.0
    %137 = vmatpush.msra.mxu0 0.0
    %138 = vmatpush.msra.mxu0 %v121
    %139 = vmatmul.f32.gmra.mxu0 %v114
    %v140 = vpop.f32.mrf.mxu0
    %v141 = vadd.f32 0.0, %v140
    %142 = vmatmul.f32.gmra.mxu0 %v117
    %v143 = vpop.f32.mrf.mxu0
    %v144 = vadd.f32 0.0, %v143
    %145 = vdwg.mxu0
    %vm146 = vcmp.gt.f32.partialorder %v141, 0.5
    %vm147 = vcmp.gt.f32.partialorder %v144, 0.5
    %vm148 = vcmp.lt.f32.partialorder %v79, 25.0
    %vm149 = vcmp.lt.f32.partialorder %v80, 25.0
    %vm150 = vmand %vm146, %vm148
    %vm151 = vmand %vm147, %vm149
    %vm152 = vcmp.ne.s32.totalorder %v108, %v111
    %vm153 = vcmp.ne.s32.totalorder %v109, %v111
    %vm154 = vmand %vm150, %vm152
    %vm155 = vmand %vm151, %vm153
    %v156 = vmul.f32 %v79, 0.04
    %v157 = vmul.f32 %v80, 0.04
    %v158 = vmin.f32 %v156, 1.0
    %v159 = vmin.f32 %v157, 1.0
    %v160 = vsub.f32 1.0, %v158
    %v161 = vsub.f32 1.0, %v159
    %v162 = vmul.f32 %v160, %v160
    %v163 = vmul.f32 %v161, %v161
    %v164 = vld [vmem:[#allocation2 + $0xe0] sm:$0xff]
    %v165 = vld [vmem:[#allocation2 + $0xe8] sm:$0xff]
    %v166 = vld [vmem:[#allocation2 + $0xf0] sm:$0xff]
    %v167 = vld [vmem:[#allocation2 + $0xf8] sm:$0xff]
    %v168 = vld [vmem:[#allocation2 + $0x100] sm:$0xff]
    %vm169 = vcmask 130048
    %v171 = vsel %vm169, %v94, 0
    %v174 = vsel %vm169, %v106, 0
    %176 = vmatpush.msra.mxu0 0.0
    %177 = vmatpush.msra.mxu0 0.0
    %178 = vmatpush.msra.mxu0 0.0
    %179 = vmatpush.msra.mxu0 0.0
    %180 = vmatpush.msra.mxu0 0.0
    %181 = vmatpush.msra.mxu0 0.0
    %182 = vmatpush.msra.mxu0 0.0
    %183 = vmatpush.msra.mxu0 0.0
    %184 = vmatpush.msra.mxu0 0.0
    %185 = vmatpush.msra.mxu0 0.0
    %186 = vmatpush.msra.mxu0 0.0
    %187 = vmatpush.msra.mxu0 0.0
    %188 = vmatpush.msra.mxu0 0.0
    %189 = vmatpush.msra.mxu0 0.0
    %190 = vmatpush.msra.mxu0 %v166
    %191 = vmatpush.msra.mxu0 %v165
    %192 = vmatmul.f32.gmra.mxu0 %v171
    %v193 = vpop.f32.mrf.mxu0
    %v194 = vadd.f32 0.0, %v193
    %195 = vmatmul.f32.gmra.mxu0 %v174
    %v196 = vpop.f32.mrf.mxu0
    %v197 = vadd.f32 0.0, %v196
    %198 = vdwg.mxu0
    %v199 = vperm.slane %v164, 2
    %v200 = vsub.f32 %v194, %v199
    %v201 = vsub.f32 %v197, %v199
    %v202 = vmul.f32 %v200, -4.0
    %v203 = vmul.f32 %v201, -4.0
    %v204 = vmul.f32 %v202, %v200
    %v205 = vmul.f32 %v203, %v201
    %v206 = vmul.f32 %v204, 1.442695
    %v207 = vpow.pop %v206
    %v208 = vmul.f32 %v205, 1.442695
    %v209 = vpow.pop %v208
    %210 = vmatpush.xpose.msra.mxu0 0.0
    %211 = vmatpush.xpose.msra.mxu0 0.0
    %212 = vmatpush.xpose.msra.mxu0 0.0
    %213 = vmatpush.xpose.msra.mxu0 0.0
    %214 = vmatpush.xpose.msra.mxu0 0.0
    %215 = vmatpush.xpose.msra.mxu0 0.0
    %216 = vmatpush.xpose.msra.mxu0 0.0
    %217 = vmatpush.xpose.msra.mxu0 0.0
    %218 = vmatpush.xpose.msra.mxu0 0.0
    %219 = vmatpush.xpose.msra.mxu0 0.0
    %220 = vmatpush.xpose.msra.mxu0 0.0
    %221 = vmatpush.xpose.msra.mxu0 0.0
    %222 = vmatpush.xpose.msra.mxu0 0.0
    %223 = vmatpush.xpose.msra.mxu0 0.0
    %224 = vmatpush.xpose.msra.mxu0 %v168
    %225 = vmatpush.xpose.msra.mxu0 %v167
    %226 = vmatmul.f32.gmra.mxu0 %v207
    %v227 = vpop.f32.mrf.mxu0
    %v228 = vadd.f32 0.0, %v227
    %229 = vmatmul.f32.gmra.mxu0 %v209
    %v230 = vpop.f32.mrf.mxu0
    %v231 = vadd.f32 0.0, %v230
    %232 = vdwg.mxu0
    %v233 = vmul.f32 %v162, %v228
    %v234 = vmul.f32 %v163, %v231
    %v235 = vsel %vm154, %v233, 0.0
    %v236 = vsel %vm155, %v234, 0.0
    %v237 = vld [vmem:[#allocation2] sm:$0xff]
    %v238 = vld [vmem:[#allocation2 + $0x8] sm:$0xff]
    %v239 = vld [vmem:[#allocation2 + $0x10] sm:$0xff]
    %v240 = vld [vmem:[#allocation2 + $0x18] sm:$0xff]
    %vm241 = vcmask 64512
    %v243 = vsel %vm241, %v237, 0
    %v246 = vsel %vm241, %v238, 0
    %v249 = vsel %vm241, %v239, 0
    %v252 = vsel %vm241, %v240, 0
    %254 = vmatpush.msra.mxu0 0.0
    %255 = vmatpush.msra.mxu0 0.0
    %256 = vmatpush.msra.mxu0 0.0
    %257 = vmatpush.msra.mxu0 0.0
    %258 = vmatpush.msra.mxu0 0.0
    %259 = vmatpush.msra.mxu0 0.0
    %260 = vmatpush.msra.mxu0 0.0
    %261 = vmatpush.msra.mxu0 0.0
    %262 = vmatpush.msra.mxu0 0.0
    %263 = vmatpush.msra.mxu0 0.0
    %264 = vmatpush.msra.mxu0 0.0
    %265 = vmatpush.msra.mxu0 0.0
    %266 = vmatpush.msra.mxu0 0.0
    %267 = vmatpush.msra.mxu0 0.0
    %268 = vmatpush.msra.mxu0 0.0
    %269 = vmatpush.msra.mxu0 %v30
    %270 = vmatmul.f32.gmra.mxu0 %v243
    %v271 = vpop.f32.mrf.mxu0
    %v272 = vadd.f32 0.0, %v271
    %273 = vmatmul.f32.gmra.mxu0 %v246
    %v274 = vpop.f32.mrf.mxu0
    %v275 = vadd.f32 0.0, %v274
    %276 = vmatmul.f32.gmra.mxu0 %v249
    %v277 = vpop.f32.mrf.mxu0
    %v278 = vadd.f32 0.0, %v277
    %279 = vmatmul.f32.gmra.mxu0 %v252
    %v280 = vpop.f32.mrf.mxu0
    %v281 = vadd.f32 0.0, %v280
    %282 = vdwg.mxu0
    %v283 = vld [vmem:[#allocation2 + $0x20] sm:$0xff]
    %v284 = vld [vmem:[#allocation2 + $0x28] sm:$0xff]
    %v285 = vld [vmem:[#allocation2 + $0x30] sm:$0xff]
    %v286 = vld [vmem:[#allocation2 + $0x38] sm:$0xff]
    %v287 = vld [vmem:[#allocation2 + $0x40] sm:$0xff]
    %v288 = vld [vmem:[#allocation2 + $0x48] sm:$0xff]
    %v289 = vld [vmem:[#allocation2 + $0x50] sm:$0xff]
    %v290 = vld [vmem:[#allocation2 + $0x58] sm:$0xff]
    %v291 = vld [vmem:[#allocation2 + $0xa0] sm:$0xff]
    %v292 = vld [vmem:[#allocation2 + $0xa8] sm:$0xff]
    %v293 = vld [vmem:[#allocation2 + $0xb0] sm:$0xff]
    %v294 = vld [vmem:[#allocation2 + $0xb8] sm:$0xff]
    %vm295 = vcmask 261120
    %v297 = vsel %vm295, %v283, 0
    %v300 = vsel %vm295, %v284, 0
    %v303 = vsel %vm295, %v285, 0
    %v306 = vsel %vm295, %v286, 0
    %308 = vmatpush.msra.mxu0 0.0
    %309 = vmatpush.msra.mxu0 0.0
    %310 = vmatpush.msra.mxu0 0.0
    %311 = vmatpush.msra.mxu0 0.0
    %312 = vmatpush.msra.mxu0 0.0
    %313 = vmatpush.msra.mxu0 0.0
    %314 = vmatpush.msra.mxu0 0.0
    %315 = vmatpush.msra.mxu0 0.0
    %316 = vmatpush.msra.mxu0 0.0
    %317 = vmatpush.msra.mxu0 0.0
    %318 = vmatpush.msra.mxu0 0.0
    %319 = vmatpush.msra.mxu0 0.0
    %320 = vmatpush.msra.mxu0 %v281
    %321 = vmatpush.msra.mxu0 %v278
    %322 = vmatpush.msra.mxu0 %v275
    %323 = vmatpush.msra.mxu0 %v272
    %324 = vmatmul.f32.gmra.mxu0 %v297
    %v325 = vpop.f32.mrf.mxu0
    %v326 = vadd.f32 0.0, %v325
    %327 = vmatmul.f32.gmra.mxu0 %v300
    %v328 = vpop.f32.mrf.mxu0
    %v329 = vadd.f32 0.0, %v328
    %330 = vmatmul.f32.gmra.mxu0 %v303
    %v331 = vpop.f32.mrf.mxu0
    %v332 = vadd.f32 0.0, %v331
    %333 = vmatmul.f32.gmra.mxu0 %v306
    %v334 = vpop.f32.mrf.mxu0
    %v335 = vadd.f32 0.0, %v334
    %336 = vdwg.mxu0
    %v338 = vsel %vm169, %v326, 0
    %v341 = vsel %vm169, %v329, 0
    %v344 = vsel %vm169, %v332, 0
    %v347 = vsel %vm169, %v335, 0
    %349 = vmatpush.msra.mxu0 0.0
    %350 = vmatpush.msra.mxu0 0.0
    %351 = vmatpush.msra.mxu0 0.0
    %352 = vmatpush.msra.mxu0 0.0
    %353 = vmatpush.msra.mxu0 0.0
    %354 = vmatpush.msra.mxu0 0.0
    %355 = vmatpush.msra.mxu0 0.0
    %356 = vmatpush.msra.mxu0 0.0
    %357 = vmatpush.msra.mxu0 0.0
    %358 = vmatpush.msra.mxu0 0.0
    %359 = vmatpush.msra.mxu0 0.0
    %360 = vmatpush.msra.mxu0 0.0
    %361 = vmatpush.msra.mxu0 0.0
    %362 = vmatpush.msra.mxu0 0.0
    %363 = vmatpush.msra.mxu0 %v236
    %364 = vmatpush.msra.mxu0 %v235
    %365 = vmatmul.f32.gmra.mxu0 %v338
    %v366 = vpop.f32.mrf.mxu0
    %v367 = vadd.f32 0.0, %v366
    %368 = vmatmul.f32.gmra.mxu0 %v341
    %v369 = vpop.f32.mrf.mxu0
    %v370 = vadd.f32 0.0, %v369
    %371 = vmatmul.f32.gmra.mxu0 %v344
    %v372 = vpop.f32.mrf.mxu0
    %v373 = vadd.f32 0.0, %v372
    %374 = vmatmul.f32.gmra.mxu0 %v347
    %v375 = vpop.f32.mrf.mxu0
    %v376 = vadd.f32 0.0, %v375
    %377 = vdwg.mxu0
    %379 = vset.pattern.permute.xlu0 0
    %380 = vperm.xlu0 %379, %v291
    %v381 = vpop.permute.xlu0 %380
    %384 = vset.pattern.permute.xlu0 0
    %385 = vperm.xlu0 %384, %v292
    %v386 = vpop.permute.xlu0 %385
    %389 = vset.pattern.permute.xlu0 0
    %390 = vperm.xlu0 %389, %v293
    %v391 = vpop.permute.xlu0 %390
    %394 = vset.pattern.permute.xlu0 0
    %395 = vperm.xlu0 %394, %v294
    %v396 = vpop.permute.xlu0 %395
    %v399 = vsel %vm295, %v287, 0
    %v402 = vsel %vm295, %v288, 0
    %v405 = vsel %vm295, %v289, 0
    %v408 = vsel %vm295, %v290, 0
    %410 = vmatpush.msra.mxu0 0.0
    %411 = vmatpush.msra.mxu0 0.0
    %412 = vmatpush.msra.mxu0 0.0
    %413 = vmatpush.msra.mxu0 0.0
    %414 = vmatpush.msra.mxu0 0.0
    %415 = vmatpush.msra.mxu0 0.0
    %416 = vmatpush.msra.mxu0 0.0
    %417 = vmatpush.msra.mxu0 0.0
    %418 = vmatpush.msra.mxu0 0.0
    %419 = vmatpush.msra.mxu0 0.0
    %420 = vmatpush.msra.mxu0 0.0
    %421 = vmatpush.msra.mxu0 0.0
    %422 = vmatpush.msra.mxu0 %v376
    %423 = vmatpush.msra.mxu0 %v373
    %424 = vmatpush.msra.mxu0 %v370
    %425 = vmatpush.msra.mxu0 %v367
    %426 = vmatmul.f32.gmra.mxu0 %v399
    %v427 = vpop.f32.mrf.mxu0
    %v428 = vadd.f32 %v381, %v427
    %429 = vmatmul.f32.gmra.mxu0 %v402
    %v430 = vpop.f32.mrf.mxu0
    %v431 = vadd.f32 %v386, %v430
    %432 = vmatmul.f32.gmra.mxu0 %v405
    %v433 = vpop.f32.mrf.mxu0
    %v434 = vadd.f32 %v391, %v433
    %435 = vmatmul.f32.gmra.mxu0 %v408
    %v436 = vpop.f32.mrf.mxu0
    %v437 = vadd.f32 %v396, %v436
    %438 = vdwg.mxu0
    %v439 = vxor.u32 %v428, 2147483648
    %v440 = vxor.u32 %v431, 2147483648
    %v441 = vxor.u32 %v434, 2147483648
    %v442 = vxor.u32 %v437, 2147483648
    %v443 = vmul.f32 %v439, 1.442695
    %v444 = vpow.pop %v443
    %v445 = vmul.f32 %v440, 1.442695
    %v446 = vpow.pop %v445
    %v447 = vmul.f32 %v441, 1.442695
    %v448 = vpow.pop %v447
    %v449 = vmul.f32 %v442, 1.442695
    %v450 = vpow.pop %v449
    %v451 = vadd.f32 %v444, 1.0
    %v452 = vadd.f32 %v446, 1.0
    %v453 = vadd.f32 %v448, 1.0
    %v454 = vadd.f32 %v450, 1.0
    %v455 = vrcp.pop %v451
    %v456 = vmul.f32 %v451, %v455
    %v457 = vsub.f32 1.0, %v456
    %v458 = vmul.f32 %v455, %v457
    %v459 = vadd.f32 %v455, %v458
    %vm460 = vweird.f32 %v451
    %vm461 = vweird.f32 %v455
    %vm462 = vmor %vm460, %vm461
    %v463 = vsel %vm462, %v455, %v459
    %v464 = vand.u32 2147483647, %v451
    %vm465 = vcmp.eq.f32.partialorder %v464, 8.507059e+37
    %v466 = vand.u32 %v451, 2147483648
    %v467 = vor.u32 1.1754944e-38, %v466
    %v468 = vsel %vm465, %v467, %v463
    %v469 = vmul.f32 1.0, %v468
    %v470 = vrcp.pop %v452
    %v471 = vmul.f32 %v452, %v470
    %v472 = vsub.f32 1.0, %v471
    %v473 = vmul.f32 %v470, %v472
    %v474 = vadd.f32 %v470, %v473
    %vm475 = vweird.f32 %v452
    %vm476 = vweird.f32 %v470
    %vm477 = vmor %vm475, %vm476
    %v478 = vsel %vm477, %v470, %v474
    %v479 = vand.u32 2147483647, %v452
    %vm480 = vcmp.eq.f32.partialorder %v479, 8.507059e+37
    %v481 = vand.u32 %v452, 2147483648
    %v482 = vor.u32 1.1754944e-38, %v481
    %v483 = vsel %vm480, %v482, %v478
    %v484 = vmul.f32 1.0, %v483
    %v485 = vrcp.pop %v453
    %v486 = vmul.f32 %v453, %v485
    %v487 = vsub.f32 1.0, %v486
    %v488 = vmul.f32 %v485, %v487
    %v489 = vadd.f32 %v485, %v488
    %vm490 = vweird.f32 %v453
    %vm491 = vweird.f32 %v485
    %vm492 = vmor %vm490, %vm491
    %v493 = vsel %vm492, %v485, %v489
    %v494 = vand.u32 2147483647, %v453
    %vm495 = vcmp.eq.f32.partialorder %v494, 8.507059e+37
    %v496 = vand.u32 %v453, 2147483648
    %v497 = vor.u32 1.1754944e-38, %v496
    %v498 = vsel %vm495, %v497, %v493
    %v499 = vmul.f32 1.0, %v498
    %v500 = vrcp.pop %v454
    %v501 = vmul.f32 %v454, %v500
    %v502 = vsub.f32 1.0, %v501
    %v503 = vmul.f32 %v500, %v502
    %v504 = vadd.f32 %v500, %v503
    %vm505 = vweird.f32 %v454
    %vm506 = vweird.f32 %v500
    %vm507 = vmor %vm505, %vm506
    %v508 = vsel %vm507, %v500, %v504
    %v509 = vand.u32 2147483647, %v454
    %vm510 = vcmp.eq.f32.partialorder %v509, 8.507059e+37
    %v511 = vand.u32 %v454, 2147483648
    %v512 = vor.u32 1.1754944e-38, %v511
    %v513 = vsel %vm510, %v512, %v508
    %v514 = vmul.f32 1.0, %v513
    %v515 = vmul.f32 %v428, %v469
    %v516 = vmul.f32 %v431, %v484
    %v517 = vmul.f32 %v434, %v499
    %v518 = vmul.f32 %v437, %v514
    %v519 = vadd.f32 %v272, %v515
    %v520 = vadd.f32 %v275, %v516
    %v521 = vadd.f32 %v278, %v517
    %v522 = vadd.f32 %v281, %v518
    %v523 = vld [vmem:[#allocation2 + $0x60] sm:$0xff]
    %v524 = vld [vmem:[#allocation2 + $0x68] sm:$0xff]
    %v525 = vld [vmem:[#allocation2 + $0x70] sm:$0xff]
    %v526 = vld [vmem:[#allocation2 + $0x78] sm:$0xff]
    %v527 = vld [vmem:[#allocation2 + $0x80] sm:$0xff]
    %v528 = vld [vmem:[#allocation2 + $0x88] sm:$0xff]
    %v529 = vld [vmem:[#allocation2 + $0x90] sm:$0xff]
    %v530 = vld [vmem:[#allocation2 + $0x98] sm:$0xff]
    %v531 = vld [vmem:[#allocation2 + $0xc0] sm:$0xff]
    %v532 = vld [vmem:[#allocation2 + $0xc8] sm:$0xff]
    %v533 = vld [vmem:[#allocation2 + $0xd0] sm:$0xff]
    %v534 = vld [vmem:[#allocation2 + $0xd8] sm:$0xff]
    %v536 = vsel %vm295, %v523, 0
    %v539 = vsel %vm295, %v524, 0
    %v542 = vsel %vm295, %v525, 0
    %v545 = vsel %vm295, %v526, 0
    %547 = vmatpush.msra.mxu0 0.0
    %548 = vmatpush.msra.mxu0 0.0
    %549 = vmatpush.msra.mxu0 0.0
    %550 = vmatpush.msra.mxu0 0.0
    %551 = vmatpush.msra.mxu0 0.0
    %552 = vmatpush.msra.mxu0 0.0
    %553 = vmatpush.msra.mxu0 0.0
    %554 = vmatpush.msra.mxu0 0.0
    %555 = vmatpush.msra.mxu0 0.0
    %556 = vmatpush.msra.mxu0 0.0
    %557 = vmatpush.msra.mxu0 0.0
    %558 = vmatpush.msra.mxu0 0.0
    %559 = vmatpush.msra.mxu0 %v522
    %560 = vmatpush.msra.mxu0 %v521
    %561 = vmatpush.msra.mxu0 %v520
    %562 = vmatpush.msra.mxu0 %v519
    %563 = vmatmul.f32.gmra.mxu0 %v536
    %v564 = vpop.f32.mrf.mxu0
    %v565 = vadd.f32 0.0, %v564
    %566 = vmatmul.f32.gmra.mxu0 %v539
    %v567 = vpop.f32.mrf.mxu0
    %v568 = vadd.f32 0.0, %v567
    %569 = vmatmul.f32.gmra.mxu0 %v542
    %v570 = vpop.f32.mrf.mxu0
    %v571 = vadd.f32 0.0, %v570
    %572 = vmatmul.f32.gmra.mxu0 %v545
    %v573 = vpop.f32.mrf.mxu0
    %v574 = vadd.f32 0.0, %v573
    %575 = vdwg.mxu0
    %v577 = vsel %vm169, %v565, 0
    %v580 = vsel %vm169, %v568, 0
    %v583 = vsel %vm169, %v571, 0
    %v586 = vsel %vm169, %v574, 0
    %588 = vmatpush.msra.mxu0 0.0
    %589 = vmatpush.msra.mxu0 0.0
    %590 = vmatpush.msra.mxu0 0.0
    %591 = vmatpush.msra.mxu0 0.0
    %592 = vmatpush.msra.mxu0 0.0
    %593 = vmatpush.msra.mxu0 0.0
    %594 = vmatpush.msra.mxu0 0.0
    %595 = vmatpush.msra.mxu0 0.0
    %596 = vmatpush.msra.mxu0 0.0
    %597 = vmatpush.msra.mxu0 0.0
    %598 = vmatpush.msra.mxu0 0.0
    %599 = vmatpush.msra.mxu0 0.0
    %600 = vmatpush.msra.mxu0 0.0
    %601 = vmatpush.msra.mxu0 0.0
    %602 = vmatpush.msra.mxu0 %v236
    %603 = vmatpush.msra.mxu0 %v235
    %604 = vmatmul.f32.gmra.mxu0 %v577
    %v605 = vpop.f32.mrf.mxu0
    %v606 = vadd.f32 0.0, %v605
    %607 = vmatmul.f32.gmra.mxu0 %v580
    %v608 = vpop.f32.mrf.mxu0
    %v609 = vadd.f32 0.0, %v608
    %610 = vmatmul.f32.gmra.mxu0 %v583
    %v611 = vpop.f32.mrf.mxu0
    %v612 = vadd.f32 0.0, %v611
    %613 = vmatmul.f32.gmra.mxu0 %v586
    %v614 = vpop.f32.mrf.mxu0
    %v615 = vadd.f32 0.0, %v614
    %616 = vdwg.mxu0
    %618 = vset.pattern.permute.xlu0 0
    %619 = vperm.xlu0 %618, %v531
    %v620 = vpop.permute.xlu0 %619
    %623 = vset.pattern.permute.xlu0 0
    %624 = vperm.xlu0 %623, %v532
    %v625 = vpop.permute.xlu0 %624
    %628 = vset.pattern.permute.xlu0 0
    %629 = vperm.xlu0 %628, %v533
    %v630 = vpop.permute.xlu0 %629
    %633 = vset.pattern.permute.xlu0 0
    %634 = vperm.xlu0 %633, %v534
    %v635 = vpop.permute.xlu0 %634
    %v638 = vsel %vm295, %v527, 0
    %v641 = vsel %vm295, %v528, 0
    %v644 = vsel %vm295, %v529, 0
    %v647 = vsel %vm295, %v530, 0
    %649 = vmatpush.msra.mxu0 0.0
    %650 = vmatpush.msra.mxu0 0.0
    %651 = vmatpush.msra.mxu0 0.0
    %652 = vmatpush.msra.mxu0 0.0
    %653 = vmatpush.msra.mxu0 0.0
    %654 = vmatpush.msra.mxu0 0.0
    %655 = vmatpush.msra.mxu0 0.0
    %656 = vmatpush.msra.mxu0 0.0
    %657 = vmatpush.msra.mxu0 0.0
    %658 = vmatpush.msra.mxu0 0.0
    %659 = vmatpush.msra.mxu0 0.0
    %660 = vmatpush.msra.mxu0 0.0
    %661 = vmatpush.msra.mxu0 %v615
    %662 = vmatpush.msra.mxu0 %v612
    %663 = vmatpush.msra.mxu0 %v609
    %664 = vmatpush.msra.mxu0 %v606
    %665 = vmatmul.f32.gmra.mxu0 %v638
    %v666 = vpop.f32.mrf.mxu0
    %v667 = vadd.f32 %v620, %v666
    %668 = vmatmul.f32.gmra.mxu0 %v641
    %v669 = vpop.f32.mrf.mxu0
    %v670 = vadd.f32 %v625, %v669
    %671 = vmatmul.f32.gmra.mxu0 %v644
    %v672 = vpop.f32.mrf.mxu0
    %v673 = vadd.f32 %v630, %v672
    %674 = vmatmul.f32.gmra.mxu0 %v647
    %v675 = vpop.f32.mrf.mxu0
    %v676 = vadd.f32 %v635, %v675
    %677 = vdwg.mxu0
    %v678 = vxor.u32 %v667, 2147483648
    %v679 = vxor.u32 %v670, 2147483648
    %v680 = vxor.u32 %v673, 2147483648
    %v681 = vxor.u32 %v676, 2147483648
    %v682 = vmul.f32 %v678, 1.442695
    %v683 = vpow.pop %v682
    %v684 = vmul.f32 %v679, 1.442695
    %v685 = vpow.pop %v684
    %v686 = vmul.f32 %v680, 1.442695
    %v687 = vpow.pop %v686
    %v688 = vmul.f32 %v681, 1.442695
    %v689 = vpow.pop %v688
    %v690 = vadd.f32 %v683, 1.0
    %v691 = vadd.f32 %v685, 1.0
    %v692 = vadd.f32 %v687, 1.0
    %v693 = vadd.f32 %v689, 1.0
    %v694 = vrcp.pop %v690
    %v695 = vmul.f32 %v690, %v694
    %v696 = vsub.f32 1.0, %v695
    %v697 = vmul.f32 %v694, %v696
    %v698 = vadd.f32 %v694, %v697
    %vm699 = vweird.f32 %v690
    %vm700 = vweird.f32 %v694
    %vm701 = vmor %vm699, %vm700
    %v702 = vsel %vm701, %v694, %v698
    %v703 = vand.u32 2147483647, %v690
    %vm704 = vcmp.eq.f32.partialorder %v703, 8.507059e+37
    %v705 = vand.u32 %v690, 2147483648
    %v706 = vor.u32 1.1754944e-38, %v705
    %v707 = vsel %vm704, %v706, %v702
    %v708 = vmul.f32 1.0, %v707
    %v709 = vrcp.pop %v691
    %v710 = vmul.f32 %v691, %v709
    %v711 = vsub.f32 1.0, %v710
    %v712 = vmul.f32 %v709, %v711
    %v713 = vadd.f32 %v709, %v712
    %vm714 = vweird.f32 %v691
    %vm715 = vweird.f32 %v709
    %vm716 = vmor %vm714, %vm715
    %v717 = vsel %vm716, %v709, %v713
    %v718 = vand.u32 2147483647, %v691
    %vm719 = vcmp.eq.f32.partialorder %v718, 8.507059e+37
    %v720 = vand.u32 %v691, 2147483648
    %v721 = vor.u32 1.1754944e-38, %v720
    %v722 = vsel %vm719, %v721, %v717
    %v723 = vmul.f32 1.0, %v722
    %v724 = vrcp.pop %v692
    %v725 = vmul.f32 %v692, %v724
    %v726 = vsub.f32 1.0, %v725
    %v727 = vmul.f32 %v724, %v726
    %v728 = vadd.f32 %v724, %v727
    %vm729 = vweird.f32 %v692
    %vm730 = vweird.f32 %v724
    %vm731 = vmor %vm729, %vm730
    %v732 = vsel %vm731, %v724, %v728
    %v733 = vand.u32 2147483647, %v692
    %vm734 = vcmp.eq.f32.partialorder %v733, 8.507059e+37
    %v735 = vand.u32 %v692, 2147483648
    %v736 = vor.u32 1.1754944e-38, %v735
    %v737 = vsel %vm734, %v736, %v732
    %v738 = vmul.f32 1.0, %v737
    %v739 = vrcp.pop %v693
    %v740 = vmul.f32 %v693, %v739
    %v741 = vsub.f32 1.0, %v740
    %v742 = vmul.f32 %v739, %v741
    %v743 = vadd.f32 %v739, %v742
    %vm744 = vweird.f32 %v693
    %vm745 = vweird.f32 %v739
    %vm746 = vmor %vm744, %vm745
    %v747 = vsel %vm746, %v739, %v743
    %v748 = vand.u32 2147483647, %v693
    %vm749 = vcmp.eq.f32.partialorder %v748, 8.507059e+37
    %v750 = vand.u32 %v693, 2147483648
    %v751 = vor.u32 1.1754944e-38, %v750
    %v752 = vsel %vm749, %v751, %v747
    %v753 = vmul.f32 1.0, %v752
    %v754 = vmul.f32 %v667, %v708
    %v755 = vmul.f32 %v670, %v723
    %v756 = vmul.f32 %v673, %v738
    %v757 = vmul.f32 %v676, %v753
    %v758 = vadd.f32 %v519, %v754
    %v759 = vadd.f32 %v520, %v755
    %v760 = vadd.f32 %v521, %v756
    %v761 = vadd.f32 %v522, %v757
    %763 = vset.pattern.permute.xlu0 0
    %764 = vperm.xlu0 %763, %v164
    %v765 = vpop.permute.xlu0 %764
    %v766 = vrot.slane %v765, 1
    %v768 = vsel %vm295, %v164, 0
    %770 = vmatpush.msra.mxu0 0.0
    %771 = vmatpush.msra.mxu0 0.0
    %772 = vmatpush.msra.mxu0 0.0
    %773 = vmatpush.msra.mxu0 0.0
    %774 = vmatpush.msra.mxu0 0.0
    %775 = vmatpush.msra.mxu0 0.0
    %776 = vmatpush.msra.mxu0 0.0
    %777 = vmatpush.msra.mxu0 0.0
    %778 = vmatpush.msra.mxu0 0.0
    %779 = vmatpush.msra.mxu0 0.0
    %780 = vmatpush.msra.mxu0 0.0
    %781 = vmatpush.msra.mxu0 0.0
    %782 = vmatpush.msra.mxu0 %v761
    %783 = vmatpush.msra.mxu0 %v760
    %784 = vmatpush.msra.mxu0 %v759
    %785 = vmatpush.msra.mxu0 %v758
    %786 = vmatmul.f32.gmra.mxu0 %v768
    %v787 = vpop.f32.mrf.mxu0
    %v788 = vadd.f32 %v766, %v787
    %789 = vdwg.mxu0
    %v791 = vsel %vm169, %v788, 0
    %793 = vmatpush.msra.mxu0 0.0
    %794 = vmatpush.msra.mxu0 0.0
    %795 = vmatpush.msra.mxu0 0.0
    %796 = vmatpush.msra.mxu0 0.0
    %797 = vmatpush.msra.mxu0 0.0
    %798 = vmatpush.msra.mxu0 0.0
    %799 = vmatpush.msra.mxu0 0.0
    %800 = vmatpush.msra.mxu0 0.0
    %801 = vmatpush.msra.mxu0 0.0
    %802 = vmatpush.msra.mxu0 0.0
    %803 = vmatpush.msra.mxu0 0.0
    %804 = vmatpush.msra.mxu0 0.0
    %805 = vmatpush.msra.mxu0 0.0
    %806 = vmatpush.msra.mxu0 0.0
    %807 = vmatpush.msra.mxu0 %v33
    %808 = vmatpush.msra.mxu0 %v32
    %809 = vmatmul.f32.gmra.mxu0 %v791
    %v810 = vpop.f32.mrf.mxu0
    %v811 = vadd.f32 0.0, %v810
    %812 = vdwg.mxu0
    %v813 = vsel %vm169, %v788, 0.0
    %v814 = vsel %vm112, %v811, 0.0
    %v816 = vrot.slane %v814, 7
    %vm818 = vcmask 1040384
    %v819 = vsel %vm818, %v813, %v816
    %v820 = vsel %vm119, %v819, 0.0
    %821 = vst [vmem:[%s2] sm:$0xff] %v820
    // Predicated region
    $region14: #{alphanet_forward.1} parent=1 // pred_check
      _
    $region15: #{alphanet_forward.1} parent=1 // pred_check_branch
      %823 = sbr.rel (0) target = $region17
    $region16: #{alphanet_forward.1} parent=1 // pred_region
      _
    $region17: #{alphanet_forward.1} parent=1 // pred_fallthru
      _
    // Predicated region
    $region18: #{alphanet_forward.1} parent=1 // pred_check
      _
    $region19: #{alphanet_forward.1} parent=1 // pred_check_branch
      %825 = sbr.rel (0) target = $region21
    $region20: #{alphanet_forward.1} parent=1 // pred_region
      _
    $region21: #{alphanet_forward.1} parent=1 // pred_fallthru
      _
    %826 = vsyncpa [#allocation3], 1

</llo_original>
